<compile_context>
chip_gen: v7x
topology: tpu7x:2x2x1
jax: 0.10.0
libtpu: 0.0.40
codegen_flags: <defaults>
</compile_context>

<pallas_src>
import functools
import math

import numpy as np

import jax
import jax.numpy as jnp
from jax import lax
from jax.experimental import pallas as pl
from jax.experimental.pallas import tpu as pltpu


def _round_up(x, m):
    return (x + m - 1) // m * m


def _l2mae_kernel(x_ref, y_ref, mask_ref, out_ref, acc_ref, *, d, tile_r,
                  row_width, n_inner, valid_rows):
    """One (outer, inner) grid step.

    x_ref / y_ref : (tile_r, row_width) blocks; each row holds row_width // d
                    complete points laid out contiguously (x0 y0 z0 x1 y1 ...).
    mask_ref      : (1, row_width) f32, 1.0 on each point's "head" lane.
    out_ref       : (1, 1) SMEM partial-sum slot for this outer index.
    acc_ref       : (tile_r, row_width) f32 VMEM accumulator, persistent
                    across the inner grid axis.
    """
    o = pl.program_id(0)
    i = pl.program_id(1)

    @pl.when(i == 0)
    def _init():
        acc_ref[...] = jnp.zeros_like(acc_ref)

    # bf16 (or other) inputs are moved over HBM in their narrow dtype and
    # up-cast here; all accumulation is f32.
    xb = x_ref[...].astype(jnp.float32)
    yb = y_ref[...].astype(jnp.float32)
    diff = xb - yb
    sq = diff * diff

    # Gather each point's sum of squares onto one lane with XLU rotations.
    # Odd d: symmetric +/-k window around the centre lane -> independent of
    # the hardware rotation direction.
    s = sq
    if d % 2 == 1:
        for k in range(1, (d - 1) // 2 + 1):
            s = s + pltpu.roll(sq, shift=k, axis=1)
            s = s + pltpu.roll(sq, shift=row_width - k, axis=1)
    else:
        # TODO(synk): even-d path assumes pltpu.roll matches jnp.roll direction
        # (not exercised by the 3-component force-loss use case).
        for k in range(1, d):
            s = s + pltpu.roll(sq, shift=k, axis=1)

    head = mask_ref[...]                                  # (1, row_width) 0/1

    # Rows past the real data (partial last block / 2-way-split overhang) hold
    # garbage -> select-mask them so NaN/Inf cannot leak into the sum.
    row = lax.broadcasted_iota(jnp.int32, (tile_r, 1), 0)
    blk = o * n_inner + i
    row_ok = (blk * tile_r + row) < valid_rows

    norms = jnp.sqrt(s) * head                            # 0 off head lanes
    acc_ref[...] += jnp.where(row_ok, norms, 0.0)

    # Single expensive cross-lane reduce + scalar store, once per partial.
    @pl.when(i == pl.num_programs(1) - 1)
    def _finalize():
        out_ref[0, 0] = jnp.sum(acc_ref[...])


def l2mae_loss(x, y, reduction="mean", tile_rows=2048):
    """L2MAELoss forward: mean/sum over points of ||x - y||_2 along last dim."""
    assert reduction in ("mean", "sum")
    assert x.shape == y.shape
    d = x.shape[-1]

    # Flatten everything: contiguous row-major flatten is free.
    xf = x.reshape(-1)
    yf = y.reshape(-1)
    n = xf.shape[0] // d                       # number of points

    # Lane packing: each packed row holds `ppr` whole points so the row width
    # d*ppr is a multiple of the 128-lane vreg width.
    ppr = 128 // math.gcd(d, 128)
    row_width = d * ppr

    total = n * d
    padded_total = _round_up(total, row_width)
    if padded_total != total:
        # TODO(synk): ragged tail (n % ppr != 0) pays one extra HBM read+write
        # for the zero-pad; aligned inputs take the fully copy-free path.
        pad = padded_total - total
        xf = jnp.pad(xf, (0, pad))
        yf = jnp.pad(yf, (0, pad))

    r = padded_total // row_width              # packed rows (ppr points each)
    xp = xf.reshape(r, row_width)              # free reshape (contiguous)
    yp = yf.reshape(r, row_width)

    # Row tiling: multiples of 8 sublanes; whole array as one block when small.
    if r < 8:
        tile_r = r
    else:
        tile_r = max(8, min(_round_up(tile_rows, 8), (r // 8) * 8))
    g = pl.cdiv(r, tile_r)                     # row blocks (last may be ragged)

    # Outer "parallel" axis: 2-way whenever there is more than one block so
    # both v7x TensorCores stay busy; overhang blocks are fully masked.
    n_outer = 2 if g >= 2 else 1
    n_inner = pl.cdiv(g, n_outer)

    # 0/1 selector for each point's "head" lane (centre lane for odd d).
    head_lane = (d - 1) // 2 if d % 2 == 1 else d - 1
    mask_host = np.zeros((1, row_width), np.float32)
    mask_host[0, head_lane::d] = 1.0
    mask = jnp.asarray(mask_host)

    kernel = functools.partial(
        _l2mae_kernel, d=d, tile_r=tile_r, row_width=row_width,
        n_inner=n_inner, valid_rows=r)

    def in_map(o, i):
        # Clamp so overhang blocks (o*n_inner+i >= g) re-read the last valid
        # block; their rows are masked out in-kernel.
        return (jnp.minimum(o * n_inner + i, g - 1), 0)

    partials = pl.pallas_call(
        kernel,
        out_shape=jax.ShapeDtypeStruct((n_outer, 1), jnp.float32),
        grid_spec=pltpu.PrefetchScalarGridSpec(
            num_scalar_prefetch=0,
            grid=(n_outer, n_inner),
            in_specs=[
                pl.BlockSpec((tile_r, row_width), in_map),
                pl.BlockSpec((tile_r, row_width), in_map),
                pl.BlockSpec((1, row_width), lambda o, i: (0, 0)),
            ],
            out_specs=pl.BlockSpec((1, 1), lambda o, i: (o, 0),
                                   memory_space=pltpu.MemorySpace.SMEM),
            scratch_shapes=[pltpu.VMEM((tile_r, row_width), jnp.float32)],
        ),
        compiler_params=pltpu.CompilerParams(
            dimension_semantics=("parallel", "arbitrary"),
            vmem_limit_bytes=32 * 1024 * 1024,
        ),
    )(xp, yp, mask)

    result = jnp.sum(partials)
    if reduction == "mean":
        # Multiply by a precomputed 1/N constant instead of dividing.
        result = result * jnp.float32(1.0 / n)
    return result


if __name__ == "__main__":
    key = jax.random.PRNGKey(0)
    k1, k2 = jax.random.split(key)

    def ref_loss(a, b, reduction):
        dists = jnp.linalg.norm(a.astype(jnp.float32) - b.astype(jnp.float32),
                                axis=-1)
        return jnp.mean(dists) if reduction == "mean" else jnp.sum(dists)

    # Force-like tensors: N atoms x 3 components (128-aligned -> copy-free path).
    N, D = 256, 3
    x = jax.random.normal(k1, (N, D), dtype=jnp.float32)
    y = jax.random.normal(k2, (N, D), dtype=jnp.float32)
    out_mean = jax.block_until_ready(l2mae_loss(x, y, "mean"))
    out_sum = jax.block_until_ready(l2mae_loss(x, y, "sum"))
    assert jnp.allclose(out_mean, ref_loss(x, y, "mean"), rtol=1e-4, atol=1e-5), (
        out_mean, ref_loss(x, y, "mean"))
    assert jnp.allclose(out_sum, ref_loss(x, y, "sum"), rtol=1e-4, atol=1e-5), (
        out_sum, ref_loss(x, y, "sum"))

    # Ragged N (not a multiple of 128): exercises the padded-tail path.
    N2 = 1000
    x2 = jax.random.normal(k1, (N2, D), dtype=jnp.float32)
    y2 = jax.random.normal(k2, (N2, D), dtype=jnp.float32)
    out2 = jax.block_until_ready(l2mae_loss(x2, y2, "mean"))
    assert jnp.allclose(out2, ref_loss(x2, y2, "mean"), rtol=1e-4, atol=1e-5), (
        out2, ref_loss(x2, y2, "mean"))

    # Leading batch dims + bf16 inputs + multi-block grid with a ragged last
    # block and 2-way parallel partials (tile_rows shrunk to force >1 block).
    B, A = 41, 128
    x3 = jax.random.normal(k1, (B, A, D), dtype=jnp.bfloat16)
    y3 = jax.random.normal(k2, (B, A, D), dtype=jnp.bfloat16)
    out3 = jax.block_until_ready(l2mae_loss(x3, y3, "sum", tile_rows=16))
    assert jnp.allclose(out3, ref_loss(x3, y3, "sum"), rtol=2e-3, atol=1e-3), (
        out3, ref_loss(x3, y3, "sum"))

    print("KERNEL_OK")
</pallas_src>

<mosaic_0001>
module attributes {stable_mosaic.version = 11 : i64} {
  func.func @_l2mae_kernel(%arg0: i32, %arg1: i32, %arg2: memref<2x384xf32, #tpu.memory_space<vmem>>, %arg3: memref<2x384xf32, #tpu.memory_space<vmem>>, %arg4: memref<1x384xf32, #tpu.memory_space<vmem>>, %arg5: memref<1x1xf32, #tpu.memory_space<smem>>, %arg6: memref<2x384xf32, #tpu.memory_space<vmem>>) attributes {dimension_semantics = [#tpu.dimension_semantics<parallel>, #tpu.dimension_semantics<arbitrary>], iteration_bounds = array<i64: 1, 1>, scalar_prefetch = 0 : i64, scratch_operands = 1 : i64, tpu.core_type = #tpu.core_type<tc>, window_params = [{transform_indices = @transform_0, window_bounds = array<i64: 2, 384>}, {transform_indices = @transform_1, window_bounds = array<i64: 2, 384>}, {pipeline_mode = #tpu.pipeline_mode<synchronous>, transform_indices = @transform_2, window_bounds = array<i64: 1, 384>}, {transform_indices = @transform_3, window_bounds = array<i64: 1, 1>}]} {
    %c0_i32 = arith.constant 0 : i32
    %0 = arith.cmpi eq, %arg1, %c0_i32 : i32
    %1 = arith.extui %0 : i1 to i32
    %c0_i32_0 = arith.constant 0 : i32
    %2 = arith.cmpi ne, %1, %c0_i32_0 : i32
    scf.if %2 {
      %cst_14 = arith.constant 0.000000e+00 : f32
      %33 = vector.broadcast %cst_14 : f32 to vector<2x384xf32>
      %c0_15 = arith.constant 0 : index
      %c0_16 = arith.constant 0 : index
      %34 = vector.load %arg6[%c0_15, %c0_16] : memref<2x384xf32, #tpu.memory_space<vmem>>, vector<2x384xf32>
      tpu.vector_store %arg6[%c0_15, %c0_16], %33 {strides = array<i32>} : memref<2x384xf32, #tpu.memory_space<vmem>>, vector<2x384xf32>,
    } else {
    }
    %c0 = arith.constant 0 : index
    %c0_1 = arith.constant 0 : index
    %3 = vector.load %arg2[%c0, %c0_1] : memref<2x384xf32, #tpu.memory_space<vmem>>, vector<2x384xf32>
    %c0_2 = arith.constant 0 : index
    %c0_3 = arith.constant 0 : index
    %4 = vector.load %arg3[%c0_2, %c0_3] : memref<2x384xf32, #tpu.memory_space<vmem>>, vector<2x384xf32>
    %5 = arith.subf %3, %4 : vector<2x384xf32>
    %6 = arith.mulf %5, %5 : vector<2x384xf32>
    %c1_i32 = arith.constant 1 : i32
    %7 = tpu.dynamic_rotate %6 by %c1_i32 dim 1 : vector<2x384xf32>, i32 -> vector<2x384xf32>
    %8 = arith.addf %6, %7 : vector<2x384xf32>
    %c383_i32 = arith.constant 383 : i32
    %9 = tpu.dynamic_rotate %6 by %c383_i32 dim 1 : vector<2x384xf32>, i32 -> vector<2x384xf32>
    %10 = arith.addf %8, %9 : vector<2x384xf32>
    %c0_4 = arith.constant 0 : index
    %c0_5 = arith.constant 0 : index
    %11 = vector.load %arg4[%c0_4, %c0_5] : memref<1x384xf32, #tpu.memory_space<vmem>>, vector<1x384xf32>
    %12 = tpu.iota {dimensions = array<i32: 0>} : vector<2x1xi32>
    %c1_i32_6 = arith.constant 1 : i32
    %13 = arith.muli %arg0, %c1_i32_6 : i32
    %14 = arith.addi %13, %arg1 : i32
    %c2_i32 = arith.constant 2 : i32
    %15 = arith.muli %14, %c2_i32 : i32
    %16 = vector.broadcast %15 : i32 to vector<2x1xi32>
    %17 = arith.addi %16, %12 : vector<2x1xi32>
    %c2_i32_7 = arith.constant 2 : i32
    %18 = vector.broadcast %c2_i32_7 : i32 to vector<2x1xi32>
    %19 = arith.cmpi slt, %17, %18 : vector<2x1xi32>
    %20 = math.sqrt %10 : vector<2x384xf32>
    %21 = vector.broadcast %11 : vector<1x384xf32> to vector<2x384xf32>
    %22 = arith.mulf %20, %21 : vector<2x384xf32>
    %c0_8 = arith.constant 0 : index
    %c0_9 = arith.constant 0 : index
    %23 = vector.load %arg6[%c0_8, %c0_9] : memref<2x384xf32, #tpu.memory_space<vmem>>, vector<2x384xf32>
    %cst = arith.constant 0.000000e+00 : f32
    %24 = vector.shape_cast %19 : vector<2x1xi1> to vector<2x1xi1>
    %25 = vector.broadcast %24 : vector<2x1xi1> to vector<2x384xi1>
    %26 = vector.broadcast %cst : f32 to vector<2x384xf32>
    %27 = arith.select %25, %22, %26 : vector<2x384xi1>, vector<2x384xf32>
    %28 = arith.addf %23, %27 : vector<2x384xf32>
    %c0_10 = arith.constant 0 : index
    %c0_11 = arith.constant 0 : index
    %29 = vector.load %arg6[%c0_10, %c0_11] : memref<2x384xf32, #tpu.memory_space<vmem>>, vector<2x384xf32>
    tpu.vector_store %arg6[%c0_10, %c0_11], %28 {strides = array<i32>} : memref<2x384xf32, #tpu.memory_space<vmem>>, vector<2x384xf32>,
    %c0_i32_12 = arith.constant 0 : i32
    %30 = arith.cmpi eq, %arg1, %c0_i32_12 : i32
    %31 = arith.extui %30 : i1 to i32
    %c0_i32_13 = arith.constant 0 : i32
    %32 = arith.cmpi ne, %31, %c0_i32_13 : i32
    scf.if %32 {
      %c0_14 = arith.constant 0 : index
      %c0_15 = arith.constant 0 : index
      %33 = vector.load %arg6[%c0_14, %c0_15] : memref<2x384xf32, #tpu.memory_space<vmem>>, vector<2x384xf32>
      %34 = vector.shape_cast %33 : vector<2x384xf32> to vector<1x2x384xf32>
      %cst_16 = arith.constant dense<0.000000e+00> : vector<1xf32>
      %35 = vector.multi_reduction <add>, %34, %cst_16 [1, 2] : vector<1x2x384xf32> to vector<1xf32>
      %36 = vector.shape_cast %35 : vector<1xf32> to vector<1x1x1xf32>
      %37 = vector.extract %36[0, 0, 0] : f32 from vector<1x1x1xf32>
      %c0_17 = arith.constant 0 : index
      %c0_18 = arith.constant 0 : index
      %38 = memref.load %arg5[%c0_17, %c0_18] : memref<1x1xf32, #tpu.memory_space<smem>>
      memref.store %37, %arg5[%c0_17, %c0_18] : memref<1x1xf32, #tpu.memory_space<smem>>
    } else {
    }
    return
  }
  func.func @transform_0(%arg0: i32, %arg1: i32) -> (i32, i32) {
    %c1_i32 = arith.constant 1 : i32
    %0 = arith.muli %arg0, %c1_i32 : i32
    %1 = arith.addi %0, %arg1 : i32
    %c0_i32 = arith.constant 0 : i32
    %2 = arith.minsi %1, %c0_i32 : i32
    %c0_i32_0 = arith.constant 0 : i32
    %c0_i32_1 = arith.constant 0 : i32
    return %2, %c0_i32_0 : i32, i32
  }
  func.func @transform_1(%arg0: i32, %arg1: i32) -> (i32, i32) {
    %c1_i32 = arith.constant 1 : i32
    %0 = arith.muli %arg0, %c1_i32 : i32
    %1 = arith.addi %0, %arg1 : i32
    %c0_i32 = arith.constant 0 : i32
    %2 = arith.minsi %1, %c0_i32 : i32
    %c0_i32_0 = arith.constant 0 : i32
    %c0_i32_1 = arith.constant 0 : i32
    return %2, %c0_i32_0 : i32, i32
  }
  func.func @transform_2(%arg0: i32, %arg1: i32) -> (i32, i32) {
    %c0_i32 = arith.constant 0 : i32
    %c0_i32_0 = arith.constant 0 : i32
    %c0_i32_1 = arith.constant 0 : i32
    return %c0_i32, %c0_i32_0 : i32, i32
  }
  func.func @transform_3(%arg0: i32, %arg1: i32) -> (i32, i32) {
    %c0_i32 = arith.constant 0 : i32
    %c0_i32_0 = arith.constant 0 : i32
    return %arg0, %c0_i32 : i32, i32
  }
}

</mosaic_0001>

<llo_original>
// kernel: tpu_custom_call.1
$region0: #{tpu_custom_call.1}
  #allocation0 [shape = 'u32[]', space=smem, size = 0x4, offset = 0x4, fixed_abs, tag = 'smem constant byte address 0x4 - core index']
  #allocation1 [shape = 'u32[144,128]{1,0:T(1,128)}', space=vmem, size = 0x12000, scoped, tag = 'internal scratch']
  #allocation2 [shape = 'f32[2,384]{1,0:T(2,128)}', space=vmem, size = 0xc00, scoped, tag = 'scratch operand']
  %s0 = inlined_call_operand.hbm [shape: f32[2,384], index: 0, kind: input, shape index: {}]
  %s1 = inlined_call_operand.hbm [shape: f32[2,384], index: 1, kind: input, shape index: {}]
  %s2 = inlined_call_operand.vmem [shape: f32[1,384], index: 2, kind: input, shape index: {}]
  %s3 = inlined_call_operand.hbm [shape: f32[1,1], index: 3, kind: output, shape index: {}]
  %s4 = sld [smem:[#allocation0]]
  $region38: #{tpu_custom_call.1} parent=0
    _
  %s6 = ssub.s32 1, %s4
  %s7 = scalar_select 0, %s6, %s4
  $region1: #{tpu_custom_call.1} parent=0
    #allocation3 [shape = 'u8[3072]{0}', space=vmem, size = 0xc00, scoped, tag = 'input window, operand 0, single buffered']
    #allocation4 [shape = 's32[1]{0}', space=sflag, size = 0x4, scoped, tag = 'scoped memory for tpu_custom_call.1']
    #allocation5 [shape = 's32[1]{0}', space=sflag, size = 0x4, scoped, tag = 'scoped memory for tpu_custom_call.1']
    #allocation6 [shape = 'u8[3072]{0}', space=vmem, size = 0xc00, scoped, tag = 'input window, operand 1, single buffered']
    #allocation7 [shape = 's32[1]{0}', space=sflag, size = 0x4, scoped, tag = 'scoped memory for tpu_custom_call.1']
    #allocation8 [shape = 'u8[512]{0}', space=smem, size = 0x200, scoped, tag = 'output window, operand 0, single buffered']
    %8 = vsyncpa [#allocation4], 0
    %9 = vsyncpa [#allocation7], 0
    %10 = vsyncpa [#allocation5], 0
    // Predicated region
    $region2: #{tpu_custom_call.1} parent=1 // pred_check
      _
    $region3: #{tpu_custom_call.1} parent=1 // pred_check_branch
      %12 = sbr.rel (0) target = $region5
    $region4: #{tpu_custom_call.1} parent=1 // pred_region
      %s13 = sadd.s32 0, 0
      %p14 = scmp.lt.s32.totalorder %s13, 0
      %s15 = scalar_select %p14, %s13, 0
      %s17 = ssub.s32 96, 96
      %18 = vsyncadd [#allocation4], %s17
      %s19 = smul.addr %s15, 3
      %s20 = smul.addr %s19, 32
      %s21 = scalar_lea.hbm %s0, %s20
      %s23 = sshll.u32 [#allocation3], 4
      %s24 = int_to_ptr.vmem [resolvable:$true] %s23
      %26 = dma.hbm_to_vmem [thread:$0]  %s21, 96, %s24, [#allocation4]
    $region5: #{tpu_custom_call.1} parent=1 // pred_fallthru
      _
    // Predicated region
    $region6: #{tpu_custom_call.1} parent=1 // pred_check
      _
    $region7: #{tpu_custom_call.1} parent=1 // pred_check_branch
      %28 = sbr.rel (0) target = $region9
    $region8: #{tpu_custom_call.1} parent=1 // pred_region
      %s29 = sadd.s32 0, 0
      %p30 = scmp.lt.s32.totalorder %s29, 0
      %s31 = scalar_select %p30, %s29, 0
      %s33 = ssub.s32 96, 96
      %34 = vsyncadd [#allocation7], %s33
      %s35 = smul.addr %s31, 3
      %s36 = smul.addr %s35, 32
      %s37 = scalar_lea.hbm %s1, %s36
      %s39 = sshll.u32 [#allocation6], 4
      %s40 = int_to_ptr.vmem [resolvable:$true] %s39
      %42 = dma.hbm_to_vmem [thread:$0]  %s37, 96, %s40, [#allocation7]
    $region9: #{tpu_custom_call.1} parent=1 // pred_fallthru
      _
    // Predicated region
    $region10: #{tpu_custom_call.1} parent=1 // pred_check
      _
    $region11: #{tpu_custom_call.1} parent=1 // pred_check_branch
      %44 = sbr.rel (0) target = $region13
    $region12: #{tpu_custom_call.1} parent=1 // pred_region
      _
    $region13: #{tpu_custom_call.1} parent=1 // pred_fallthru
      _
    // Predicated region
    $region14: #{tpu_custom_call.1} parent=1 // pred_check
      _
    $region15: #{tpu_custom_call.1} parent=1 // pred_check_branch
      %46 = sbr.rel (0) target = $region17
    $region16: #{tpu_custom_call.1} parent=1 // pred_region
      %47 = dma.done [#allocation4], 96
    $region17: #{tpu_custom_call.1} parent=1 // pred_fallthru
      _
    // Predicated region
    $region18: #{tpu_custom_call.1} parent=1 // pred_check
      _
    $region19: #{tpu_custom_call.1} parent=1 // pred_check_branch
      %49 = sbr.rel (0) target = $region21
    $region20: #{tpu_custom_call.1} parent=1 // pred_region
      %50 = dma.done [#allocation7], 96
    $region21: #{tpu_custom_call.1} parent=1 // pred_fallthru
      _
    %s51 = sadd.s32 0, 0
    %p52 = scmp.lt.s32.totalorder %s51, 0
    %s53 = scalar_select %p52, %s51, 0
    %s54 = sadd.s32 0, 0
    %p55 = scmp.lt.s32.totalorder %s54, 0
    %s56 = scalar_select %p55, %s54, 0
    %p57 = scmp.eq.s32.totalorder 0, 0
    // Predicated region
    $region22: #{tpu_custom_call.1} parent=1 // pred_check
      %p58 = pneg %p57
    $region23: #{tpu_custom_call.1} parent=1 // pred_check_branch
      %60 = sbr.rel (%p58) target = $region25
    $region24: #{tpu_custom_call.1} parent=1 // pred_region
      %61 = vst [vmem:[#allocation2] sm:$0x3f] 0.0
    $region25: #{tpu_custom_call.1} parent=1 // pred_fallthru
      _
    %v62 = vld [vmem:[#allocation3] sm:$0x3f]
    %v63 = vld [vmem:[#allocation6] sm:$0x3f]
    %v64 = vsub.f32 %v62, %v63
    %v65 = vmul.f32 %v64, %v64
    %v67 = vcombine.high %v65, %v65
    %v69 = vunpack.c.l.s4 1983009808
    %v70 = vunpack.c.0.s8 %v69
    %v71 = vlaneseq
    %v72 = vshrl.u32 %v71, 7
    %v73 = vsub.s32 %v70, %v72
    %v74 = vrot.slane %v65, %v73
    %v76 = vunpack.c.l.s4 1983009808
    %v77 = vunpack.c.0.s8 %v76
    %v78 = vlaneseq
    %v79 = vshrl.u32 %v78, 7
    %v80 = vsub.s32 %v77, %v79
    %v81 = vrot.slane %v67, %v80
    %v82 = vcombine.high %v74, %v74
    %86 = vrot.lane.b32.xlu0 %v74, 1
    %v87 = vpop.permute.xlu0 %86
    %88 = vrot.lane.b32.xlu0 %v82, 1
    %v89 = vpop.permute.xlu0 %88
    %90 = vrot.lane.b32.xlu0 %v81, 1
    %v91 = vpop.permute.xlu0 %90
    %v92 = vlaneseq
    %v93 = vand.u32 %v92, 127
    %vm94 = vcmp.lt.s32.totalorder %v93, 1
    %v95 = vsel %vm94, %v89, %v91
    %v96 = vsel %vm94, %v87, %v89
    %v97 = vsel %vm94, %v91, %v87
    %v101 = vcombine.low %v97, %v96
    %v103 = vunpack.c.l.s4 1983009808
    %v104 = vunpack.c.0.s8 %v103
    %v105 = vlaneseq
    %v106 = vshrl.u32 %v105, 7
    %v107 = vsub.s32 %v104, %v106
    %v108 = vrot.slane %v101, %v107
    %v110 = vunpack.c.l.s4 1983009808
    %v111 = vunpack.c.0.s8 %v110
    %v112 = vlaneseq
    %v113 = vshrl.u32 %v112, 7
    %v114 = vsub.s32 %v111, %v113
    %v115 = vrot.slane %v95, %v114
    %v116 = vcombine.low %v108, %v115
    %v118 = vadd.f32 %v65, %v116
    %119 = vrot.lane.b32.xlu0 %v74, 127
    %v120 = vpop.permute.xlu0 %119
    %121 = vrot.lane.b32.xlu0 %v82, 127
    %v122 = vpop.permute.xlu0 %121
    %123 = vrot.lane.b32.xlu0 %v81, 127
    %v124 = vpop.permute.xlu0 %123
    %vm125 = vcmp.lt.s32.totalorder %v93, 127
    %v126 = vsel %vm125, %v122, %v124
    %v127 = vsel %vm125, %v120, %v122
    %v128 = vsel %vm125, %v124, %v120
    %v132 = vcombine.low %v127, %v126
    %v134 = vunpack.c.l.s4 1983009808
    %v135 = vunpack.c.0.s8 %v134
    %v136 = vlaneseq
    %v137 = vshrl.u32 %v136, 7
    %v138 = vsub.s32 %v135, %v137
    %v139 = vrot.slane %v132, %v138
    %v141 = vunpack.c.l.s4 1983009808
    %v142 = vunpack.c.0.s8 %v141
    %v143 = vlaneseq
    %v144 = vshrl.u32 %v143, 7
    %v145 = vsub.s32 %v142, %v144
    %v146 = vrot.slane %v128, %v145
    %v147 = vcombine.low %v139, %v146
    %v149 = vadd.f32 %v118, %v147
    %v150 = vld [vmem:[%s2] sm:$0x7]
    %v151 = vlaneseq
    %v152 = vshrl.u32 %v151, 7
    %s153 = sadd.s32 0, 0
    %s154 = smul.u32 %s153, 2
    %v155 = vstv %s154
    %v156 = vadd.s32 %v155, %v152
    %vm157 = vcmp.lt.s32.totalorder %v156, 2
    %v158 = vrsqrt.pop %v149
    %v159 = vmul.f32 %v149, %v158
    %vm160 = vcmp.eq.f32.partialorder %v149, inf
    %v161 = vsel %vm160, %v149, %v159
    %vm162 = vcmp.eq.f32.partialorder %v149, 0.0
    %v163 = vand.u32 %v149, 2147483648
    %v164 = vsel %vm162, %v163, %v161
    %v166 = vlaneseq
    %v167 = vshrl.u32 %v166, 7
    %v168 = vsub.s32 0, %v167
    %v169 = vrot.slane %v150, %v168
    %v170 = vlaneseq
    %v171 = vshrl.u32 %v170, 7
    %v172 = vsub.s32 1, %v171
    %v173 = vrot.slane %v150, %v172
    %v174 = vlaneseq
    %v175 = vshrl.u32 %v174, 7
    %v176 = vsub.s32 2, %v175
    %v177 = vrot.slane %v150, %v176
    %v178 = vcombine.low %v169, %v173
    %v180 = vunpack.c.l.s4 1983009808
    %v181 = vunpack.c.0.s8 %v180
    %v182 = vlaneseq
    %v183 = vshrl.u32 %v182, 7
    %v184 = vsub.s32 %v181, %v183
    %v185 = vrot.slane %v178, %v184
    %v187 = vunpack.c.l.s4 1983009808
    %v188 = vunpack.c.0.s8 %v187
    %v189 = vlaneseq
    %v190 = vshrl.u32 %v189, 7
    %v191 = vsub.s32 %v188, %v190
    %v192 = vrot.slane %v177, %v191
    %v193 = vcombine.low %v185, %v192
    %v195 = vmul.f32 %v164, %v193
    %v196 = vld [vmem:[#allocation2] sm:$0x3f]
    %v197 = vsel %vm157, 1, 0
    %vm198 = vcmp.eq.s32.totalorder %v197, 1
    %v200 = vcombine.high %v195, %v195
    %v202 = vunpack.c.l.s4 1983009808
    %v203 = vunpack.c.0.s8 %v202
    %v204 = vlaneseq
    %v205 = vshrl.u32 %v204, 7
    %v206 = vsub.s32 %v203, %v205
    %v207 = vrot.slane %v195, %v206
    %v209 = vunpack.c.l.s4 1983009808
    %v210 = vunpack.c.0.s8 %v209
    %v211 = vlaneseq
    %v212 = vshrl.u32 %v211, 7
    %v213 = vsub.s32 %v210, %v212
    %v214 = vrot.slane %v200, %v213
    %v215 = vcombine.high %v207, %v207
    %v219 = vsel %vm198, %v207, 0.0
    %v220 = vsel %vm198, %v215, 0.0
    %v221 = vsel %vm198, %v214, 0.0
    %v225 = vcombine.low %v219, %v220
    %v227 = vunpack.c.l.s4 1983009808
    %v228 = vunpack.c.0.s8 %v227
    %v229 = vlaneseq
    %v230 = vshrl.u32 %v229, 7
    %v231 = vsub.s32 %v228, %v230
    %v232 = vrot.slane %v225, %v231
    %v234 = vunpack.c.l.s4 1983009808
    %v235 = vunpack.c.0.s8 %v234
    %v236 = vlaneseq
    %v237 = vshrl.u32 %v236, 7
    %v238 = vsub.s32 %v235, %v237
    %v239 = vrot.slane %v221, %v238
    %v240 = vcombine.low %v232, %v239
    %v242 = vadd.f32 %v196, %v240
    %243 = vst [vmem:[#allocation2] sm:$0x3f] %v242
    // Predicated region
    $region26: #{tpu_custom_call.1} parent=1 // pred_check
      %p244 = pneg %p57
    $region27: #{tpu_custom_call.1} parent=1 // pred_check_branch
      %246 = sbr.rel (%p244) target = $region29
    $region28: #{tpu_custom_call.1} parent=1 // pred_region
      %v247 = vld [vmem:[#allocation2] sm:$0x3f]
      %v249 = vcombine.high %v247, %v247
      %v251 = vunpack.c.l.s4 1983009808
      %v252 = vunpack.c.0.s8 %v251
      %v253 = vlaneseq
      %v254 = vshrl.u32 %v253, 7
      %v255 = vsub.s32 %v252, %v254
      %v256 = vrot.slane %v247, %v255
      %v258 = vunpack.c.l.s4 1983009808
      %v259 = vunpack.c.0.s8 %v258
      %v260 = vlaneseq
      %v261 = vshrl.u32 %v260, 7
      %v262 = vsub.s32 %v259, %v261
      %v263 = vrot.slane %v249, %v262
      %v264 = vcombine.high %v256, %v256
      %vm268 = vcmask 1041408
      %v269 = vsel %vm268, %v256, 0.0
      %v270 = vsel %vm268, %v264, 0.0
      %v271 = vadd.f32 %v269, %v270
      %v272 = vsel %vm268, %v263, 0.0
      %v273 = vadd.f32 %v271, %v272
      %274 = vadd.xlane.f32.xlu0 %v273
      %v275 = vpop.xlane.xlu0 %274
      %v276 = vrot.slane %v275, 4
      %v277 = vadd.f32 %v275, %v276
      %v278 = vrot.slane %v277, 2
      %v279 = vadd.f32 %v277, %v278
      %v280 = vrot.slane %v279, 1
      %v281 = vadd.f32 %v279, %v280
      %s282 = vtos %v281
      %s283 = scalar_lea.smem [#allocation8], 0
      %284 = sst [smem:[%s283]] %s282
    $region29: #{tpu_custom_call.1} parent=1 // pred_fallthru
      _
    // Predicated region
    $region30: #{tpu_custom_call.1} parent=1 // pred_check
      _
    $region31: #{tpu_custom_call.1} parent=1 // pred_check_branch
      %286 = sbr.rel (0) target = $region33
    $region32: #{tpu_custom_call.1} parent=1 // pred_region
      %s288 = ssub.s32 16, 16
      %289 = vsyncadd [#allocation5], %s288
      %292 = dma.smem_to_hbm [#allocation8], 16, %s3, [#allocation5]
    $region33: #{tpu_custom_call.1} parent=1 // pred_fallthru
      _
    // Predicated region
    $region34: #{tpu_custom_call.1} parent=1 // pred_check
      _
    $region35: #{tpu_custom_call.1} parent=1 // pred_check_branch
      %294 = sbr.rel (0) target = $region37
    $region36: #{tpu_custom_call.1} parent=1 // pred_region
      %295 = dma.done [#allocation5], 16
    $region37: #{tpu_custom_call.1} parent=1 // pred_fallthru
      _
    %296 = sfence
    %297 = vsyncpa [#allocation4], 1
    %298 = vsyncpa [#allocation7], 1
    %299 = vsyncpa [#allocation5], 1

</llo_original>
